<compile_context>
chip_gen: v7x
topology: tpu7x:2x2x1
jax: 0.10.0
libtpu: 0.0.40
codegen_flags: <defaults>
</compile_context>

<pallas_src>
import jax
import jax.numpy as jnp
from jax import lax
from jax.experimental import pallas as pl
from jax.experimental.pallas import tpu as pltpu


def _round_up(x, m):
    return ((x + m - 1) // m) * m


def _fused_cbow_kernel(ctx_ref, emb_ref, w_ref, bias_ref, out_ref, x_ref):
    """ctx_ref : (B, C) int32 context ids (full block, VMEM)
       emb_ref : (V, D) f32 embedding table (full block, fetched once)
       w_ref   : (tn, D) bf16 weight tile, torch (out, in) layout
       bias_ref: (1, tn) f32 bias tile
       out_ref : (B, tn) f32 logits tile
       x_ref   : (B, D) bf16 VMEM scratch = mean embedding (persists across
                 vocab tiles)."""
    j = pl.program_id(0)
    B, D = x_ref.shape
    C = ctx_ref.shape[1]
    V = emb_ref.shape[0]

    # ---- gather + mean over context: computed once, reused for every tile.
    @pl.when(j == 0)
    def _():
        ctx = ctx_ref[...]                                        # (B, C) i32
        vocab_iota = lax.broadcasted_iota(jnp.int32, (B, V), 1)   # (B, V)
        counts = jnp.zeros((B, V), jnp.float32)
        for c in range(C):                                        # static, unrolled
            counts = counts + (vocab_iota == ctx[:, c:c + 1]).astype(jnp.float32)
        # mean embedding = (counts @ table) / C   -- tiny MXU matmul
        x = jnp.dot(counts, emb_ref[...],
                    preferred_element_type=jnp.float32) * (1.0 / C)
        x_ref[...] = x.astype(x_ref.dtype)                        # bf16 scratch

    # ---- linear: (B, D) x (tn, D)^T -> (B, tn), f32 accumulation, fused bias.
    logits = lax.dot_general(
        x_ref[...], w_ref[...],
        dimension_numbers=(((1,), (1,)), ((), ())),
        preferred_element_type=jnp.float32)
    out_ref[...] = logits + bias_ref[...]


def prepare_params(emb_table, weight, bias, *, tn=None):
    """One-time parameter prep, hoisted out of the per-call forward:
    bf16 weight cast + zero-pad V to a lane-dense tile multiple (torch (V, D)
    layout is kept, so no transposed copy is ever created)."""
    V, D = emb_table.shape
    assert weight.shape == (V, D) and bias.shape == (V,)
    if tn is None:
        tn = 512 if V >= 512 else 128          # lane-dense, multiple of 128
    v_pad = _round_up(V, tn)
    w = weight.astype(jnp.bfloat16)
    b = bias.astype(jnp.float32)
    if v_pad != V:
        w = jnp.pad(w, ((0, v_pad - V), (0, 0)))
        b = jnp.pad(b, (0, v_pad - V))
    return {
        "emb": emb_table.astype(jnp.float32),
        "w": w,                                # (v_pad, D) bf16
        "bias2d": b.reshape(1, v_pad),         # (1, v_pad) f32
        "tn": tn, "V": V, "v_pad": v_pad,
    }


def word2vec_forward(context, params):
    """CBOW forward.  context: (B, C) int ids -> (B, V) f32 logits."""
    emb, w, bias2d = params["emb"], params["w"], params["bias2d"]
    tn, V, v_pad = params["tn"], params["V"], params["v_pad"]
    B, C = context.shape
    Vt, D = emb.shape
    context = context.astype(jnp.int32)

    cost = pl.CostEstimate(
        flops=2 * B * D * v_pad + 2 * B * Vt * D,
        transcendentals=0,
        bytes_accessed=(Vt * D * 4            # embedding table (once)
                        + v_pad * D * 2       # bf16 weight stream
                        + v_pad * 4           # bias
                        + B * C * 4           # context ids
                        + B * v_pad * 4),     # logits out
    )

    logits = pl.pallas_call(
        _fused_cbow_kernel,
        out_shape=jax.ShapeDtypeStruct((B, v_pad), jnp.float32),
        grid_spec=pltpu.PrefetchScalarGridSpec(
            num_scalar_prefetch=0,
            grid=(v_pad // tn,),
            in_specs=[
                # Constant block index -> each fetched exactly once.
                pl.BlockSpec((B, C), lambda j: (0, 0)),      # context ids
                pl.BlockSpec((Vt, D), lambda j: (0, 0)),     # full emb table
                # Streamed per-tile operands (lane-dense tn).
                pl.BlockSpec((tn, D), lambda j: (j, 0)),     # weight tile
                pl.BlockSpec((1, tn), lambda j: (0, j)),     # bias tile
            ],
            out_specs=pl.BlockSpec((B, tn), lambda j: (0, j)),
            scratch_shapes=[pltpu.VMEM((B, D), jnp.bfloat16)],
        ),
        compiler_params=pltpu.CompilerParams(
            # Must be "arbitrary": tiles j > 0 reuse the j == 0 scratch init.
            dimension_semantics=("arbitrary",)),
        cost_estimate=cost,
    )(context, emb, w, bias2d)

    return logits[:, :V]


def reference_forward(context, emb_table, weight, bias):
    embeds = jnp.take(emb_table, context, axis=0)      # (B, C, D)
    mean_emb = jnp.mean(embeds, axis=1)                # (B, D)
    return mean_emb @ weight.T + bias                  # (B, V)


if __name__ == "__main__":
    # Small shapes consistent with the module: batch=8 contexts of length 8,
    # vocab_size=64, embedding_dim=32.  (B=8, D=32 leave the MXU underfilled;
    # this workload is HBM-bound, hence the single fused, weight-streaming
    # kernel design.)
    B, C, V, D = 8, 8, 64, 32

    key = jax.random.PRNGKey(0)
    k_ctx, k_emb, k_w, k_b = jax.random.split(key, 4)

    context = jax.random.randint(k_ctx, (B, C), 0, V, dtype=jnp.int32)
    emb_table = jax.random.normal(k_emb, (V, D), dtype=jnp.float32)
    bound = float(D) ** -0.5
    weight = jax.random.uniform(k_w, (V, D), jnp.float32, -bound, bound)
    bias = jax.random.uniform(k_b, (V,), jnp.float32, -bound, bound)

    params = prepare_params(emb_table, weight, bias)   # one-time weight prep
    out = word2vec_forward(context, params)
    out = jax.block_until_ready(out)

    ref = reference_forward(context, emb_table, weight, bias)
    assert out.shape == (B, V) and out.dtype == jnp.float32
    # bf16 mean-embedding and bf16 weight (f32 MXU accumulation): tolerance
    # reflects bf16 rounding of both matmul operands.
    assert jnp.allclose(out, ref, atol=2e-2, rtol=2e-2), "mismatch vs reference"

    print("KERNEL_OK")
</pallas_src>

<mosaic_0001>
module attributes {stable_mosaic.version = 11 : i64} {
  func.func @_fused_cbow_kernel(%arg0: i32, %arg1: memref<8x8xi32, #tpu.memory_space<vmem>>, %arg2: memref<64x32xf32, #tpu.memory_space<vmem>>, %arg3: memref<128x32xbf16, #tpu.memory_space<vmem>>, %arg4: memref<1x128xf32, #tpu.memory_space<vmem>>, %arg5: memref<8x128xf32, #tpu.memory_space<vmem>>, %arg6: memref<8x32xbf16, #tpu.memory_space<vmem>>) attributes {dimension_semantics = [#tpu.dimension_semantics<arbitrary>], iteration_bounds = array<i64: 1>, scalar_prefetch = 0 : i64, scratch_operands = 1 : i64, tpu.core_type = #tpu.core_type<tc>, window_params = [{pipeline_mode = #tpu.pipeline_mode<synchronous>, transform_indices = @transform_0, window_bounds = array<i64: 8, 8>}, {pipeline_mode = #tpu.pipeline_mode<synchronous>, transform_indices = @transform_1, window_bounds = array<i64: 64, 32>}, {transform_indices = @transform_2, window_bounds = array<i64: 128, 32>}, {transform_indices = @transform_3, window_bounds = array<i64: 1, 128>}, {transform_indices = @transform_4, window_bounds = array<i64: 8, 128>}]} {
    %c0_i32 = arith.constant 0 : i32
    %0 = arith.cmpi eq, %arg0, %c0_i32 : i32
    %1 = arith.extui %0 : i1 to i32
    %c0_i32_0 = arith.constant 0 : i32
    %2 = arith.cmpi ne, %1, %c0_i32_0 : i32
    scf.if %2 {
      %c0_8 = arith.constant 0 : index
      %c0_9 = arith.constant 0 : index
      %10 = vector.load %arg1[%c0_8, %c0_9] : memref<8x8xi32, #tpu.memory_space<vmem>>, vector<8x8xi32>
      %11 = tpu.iota {dimensions = array<i32: 1>} : vector<8x64xi32>
      %cst_10 = arith.constant 0.000000e+00 : f32
      %12 = vector.broadcast %cst_10 : f32 to vector<8x64xf32>
      %13 = vector.extract_strided_slice %10 {offsets = [0, 0], sizes = [8, 1], strides = [1, 1]} : vector<8x8xi32> to vector<8x1xi32>
      %14 = vector.broadcast %13 : vector<8x1xi32> to vector<8x64xi32>
      %15 = arith.cmpi eq, %11, %14 : vector<8x64xi32>
      %16 = arith.extui %15 : vector<8x64xi1> to vector<8x64xi32>
      %17 = arith.sitofp %16 : vector<8x64xi32> to vector<8x64xf32>
      %18 = arith.addf %12, %17 : vector<8x64xf32>
      %19 = vector.extract_strided_slice %10 {offsets = [0, 1], sizes = [8, 1], strides = [1, 1]} : vector<8x8xi32> to vector<8x1xi32>
      %20 = vector.broadcast %19 : vector<8x1xi32> to vector<8x64xi32>
      %21 = arith.cmpi eq, %11, %20 : vector<8x64xi32>
      %22 = arith.extui %21 : vector<8x64xi1> to vector<8x64xi32>
      %23 = arith.sitofp %22 : vector<8x64xi32> to vector<8x64xf32>
      %24 = arith.addf %18, %23 : vector<8x64xf32>
      %25 = vector.extract_strided_slice %10 {offsets = [0, 2], sizes = [8, 1], strides = [1, 1]} : vector<8x8xi32> to vector<8x1xi32>
      %26 = vector.broadcast %25 : vector<8x1xi32> to vector<8x64xi32>
      %27 = arith.cmpi eq, %11, %26 : vector<8x64xi32>
      %28 = arith.extui %27 : vector<8x64xi1> to vector<8x64xi32>
      %29 = arith.sitofp %28 : vector<8x64xi32> to vector<8x64xf32>
      %30 = arith.addf %24, %29 : vector<8x64xf32>
      %31 = vector.extract_strided_slice %10 {offsets = [0, 3], sizes = [8, 1], strides = [1, 1]} : vector<8x8xi32> to vector<8x1xi32>
      %32 = vector.broadcast %31 : vector<8x1xi32> to vector<8x64xi32>
      %33 = arith.cmpi eq, %11, %32 : vector<8x64xi32>
      %34 = arith.extui %33 : vector<8x64xi1> to vector<8x64xi32>
      %35 = arith.sitofp %34 : vector<8x64xi32> to vector<8x64xf32>
      %36 = arith.addf %30, %35 : vector<8x64xf32>
      %37 = vector.extract_strided_slice %10 {offsets = [0, 4], sizes = [8, 1], strides = [1, 1]} : vector<8x8xi32> to vector<8x1xi32>
      %38 = vector.broadcast %37 : vector<8x1xi32> to vector<8x64xi32>
      %39 = arith.cmpi eq, %11, %38 : vector<8x64xi32>
      %40 = arith.extui %39 : vector<8x64xi1> to vector<8x64xi32>
      %41 = arith.sitofp %40 : vector<8x64xi32> to vector<8x64xf32>
      %42 = arith.addf %36, %41 : vector<8x64xf32>
      %43 = vector.extract_strided_slice %10 {offsets = [0, 5], sizes = [8, 1], strides = [1, 1]} : vector<8x8xi32> to vector<8x1xi32>
      %44 = vector.broadcast %43 : vector<8x1xi32> to vector<8x64xi32>
      %45 = arith.cmpi eq, %11, %44 : vector<8x64xi32>
      %46 = arith.extui %45 : vector<8x64xi1> to vector<8x64xi32>
      %47 = arith.sitofp %46 : vector<8x64xi32> to vector<8x64xf32>
      %48 = arith.addf %42, %47 : vector<8x64xf32>
      %49 = vector.extract_strided_slice %10 {offsets = [0, 6], sizes = [8, 1], strides = [1, 1]} : vector<8x8xi32> to vector<8x1xi32>
      %50 = vector.broadcast %49 : vector<8x1xi32> to vector<8x64xi32>
      %51 = arith.cmpi eq, %11, %50 : vector<8x64xi32>
      %52 = arith.extui %51 : vector<8x64xi1> to vector<8x64xi32>
      %53 = arith.sitofp %52 : vector<8x64xi32> to vector<8x64xf32>
      %54 = arith.addf %48, %53 : vector<8x64xf32>
      %55 = vector.extract_strided_slice %10 {offsets = [0, 7], sizes = [8, 1], strides = [1, 1]} : vector<8x8xi32> to vector<8x1xi32>
      %56 = vector.broadcast %55 : vector<8x1xi32> to vector<8x64xi32>
      %57 = arith.cmpi eq, %11, %56 : vector<8x64xi32>
      %58 = arith.extui %57 : vector<8x64xi1> to vector<8x64xi32>
      %59 = arith.sitofp %58 : vector<8x64xi32> to vector<8x64xf32>
      %60 = arith.addf %54, %59 : vector<8x64xf32>
      %c0_11 = arith.constant 0 : index
      %c0_12 = arith.constant 0 : index
      %61 = vector.load %arg2[%c0_11, %c0_12] : memref<64x32xf32, #tpu.memory_space<vmem>>, vector<64x32xf32>
      %cst_13 = arith.constant dense<0.000000e+00> : vector<8x32xf32>
      %62 = tpu.matmul %60, %61, %cst_13 {dimension_numbers = #tpu.dot_dimension_numbers<[1], [0], [0], [1], [0, 0, 1, 1], [], []>} : vector<8x64xf32>, vector<64x32xf32>, vector<8x32xf32> -> vector<8x32xf32>
      %cst_14 = arith.constant 1.250000e-01 : f32
      %63 = vector.broadcast %cst_14 : f32 to vector<8x32xf32>
      %64 = arith.mulf %62, %63 : vector<8x32xf32>
      %65 = arith.truncf %64 : vector<8x32xf32> to vector<8x32xbf16>
      %c0_15 = arith.constant 0 : index
      %c0_16 = arith.constant 0 : index
      %66 = vector.load %arg6[%c0_15, %c0_16] : memref<8x32xbf16, #tpu.memory_space<vmem>>, vector<8x32xbf16>
      tpu.vector_store %arg6[%c0_15, %c0_16], %65 {strides = array<i32>} : memref<8x32xbf16, #tpu.memory_space<vmem>>, vector<8x32xbf16>,
    } else {
    }
    %c0 = arith.constant 0 : index
    %c0_1 = arith.constant 0 : index
    %3 = vector.load %arg6[%c0, %c0_1] : memref<8x32xbf16, #tpu.memory_space<vmem>>, vector<8x32xbf16>
    %c0_2 = arith.constant 0 : index
    %c0_3 = arith.constant 0 : index
    %4 = vector.load %arg3[%c0_2, %c0_3] : memref<128x32xbf16, #tpu.memory_space<vmem>>, vector<128x32xbf16>
    %cst = arith.constant dense<0.000000e+00> : vector<8x128xf32>
    %5 = tpu.matmul %3, %4, %cst {dimension_numbers = #tpu.dot_dimension_numbers<[1], [1], [0], [0], [0, 0, 1, 0], [], []>} : vector<8x32xbf16>, vector<128x32xbf16>, vector<8x128xf32> -> vector<8x128xf32>
    %c0_4 = arith.constant 0 : index
    %c0_5 = arith.constant 0 : index
    %6 = vector.load %arg4[%c0_4, %c0_5] : memref<1x128xf32, #tpu.memory_space<vmem>>, vector<1x128xf32>
    %7 = vector.broadcast %6 : vector<1x128xf32> to vector<8x128xf32>
    %8 = arith.addf %5, %7 : vector<8x128xf32>
    %c0_6 = arith.constant 0 : index
    %c0_7 = arith.constant 0 : index
    %9 = vector.load %arg5[%c0_6, %c0_7] : memref<8x128xf32, #tpu.memory_space<vmem>>, vector<8x128xf32>
    tpu.vector_store %arg5[%c0_6, %c0_7], %8 {strides = array<i32>} : memref<8x128xf32, #tpu.memory_space<vmem>>, vector<8x128xf32>,
    return
  }
  func.func @transform_0(%arg0: i32) -> (i32, i32) {
    %c0_i32 = arith.constant 0 : i32
    %c0_i32_0 = arith.constant 0 : i32
    %c0_i32_1 = arith.constant 0 : i32
    return %c0_i32, %c0_i32_0 : i32, i32
  }
  func.func @transform_1(%arg0: i32) -> (i32, i32) {
    %c0_i32 = arith.constant 0 : i32
    %c0_i32_0 = arith.constant 0 : i32
    %c0_i32_1 = arith.constant 0 : i32
    return %c0_i32, %c0_i32_0 : i32, i32
  }
  func.func @transform_2(%arg0: i32) -> (i32, i32) {
    %c0_i32 = arith.constant 0 : i32
    %c0_i32_0 = arith.constant 0 : i32
    return %arg0, %c0_i32 : i32, i32
  }
  func.func @transform_3(%arg0: i32) -> (i32, i32) {
    %c0_i32 = arith.constant 0 : i32
    %c0_i32_0 = arith.constant 0 : i32
    return %c0_i32, %arg0 : i32, i32
  }
  func.func @transform_4(%arg0: i32) -> (i32, i32) {
    %c0_i32 = arith.constant 0 : i32
    %c0_i32_0 = arith.constant 0 : i32
    return %c0_i32, %arg0 : i32, i32
  }
}

</mosaic_0001>

<llo_original>
// kernel: tpu_custom_call.1
$region0: #{tpu_custom_call.1}
  #allocation0 [shape = 'u32[]', space=smem, size = 0x4, offset = 0x4, fixed_abs, tag = 'smem constant byte address 0x4 - core index']
  #allocation1 [shape = 'u32[144,128]{1,0:T(1,128)}', space=vmem, size = 0x12000, scoped, tag = 'internal scratch']
  #allocation2 [shape = 'bf16[8,32]{1,0:T(8,128)(2,1)}', space=vmem, size = 0x800, scoped, tag = 'scratch operand']
  %s0 = inlined_call_operand.vmem [shape: s32[8,8], index: 0, kind: input, shape index: {}]
  %s1 = inlined_call_operand.vmem [shape: f32[64,32], index: 1, kind: input, shape index: {}]
  %s2 = inlined_call_operand.vmem [shape: bf16[128,32], index: 2, kind: input, shape index: {}]
  %s3 = inlined_call_operand.vmem [shape: f32[1,128], index: 3, kind: input, shape index: {}]
  %s4 = inlined_call_operand.hbm [shape: f32[8,128], index: 4, kind: output, shape index: {}]
  %s5 = sld [smem:[#allocation0]]
  $region30: #{tpu_custom_call.1} parent=0
    _
  %s7 = ssub.s32 1, %s5
  %s8 = scalar_select 0, %s7, %s5
  $region1: #{tpu_custom_call.1} parent=0
    #allocation3 [shape = 'u8[4096]{0}', space=vmem, size = 0x1000, scoped, tag = 'output window, operand 0, single buffered']
    #allocation4 [shape = 's32[1]{0}', space=sflag, size = 0x4, scoped, tag = 'scoped memory for tpu_custom_call.1']
    %9 = vsyncpa [#allocation4], 0
    // Predicated region
    $region2: #{tpu_custom_call.1} parent=1 // pred_check
      _
    $region3: #{tpu_custom_call.1} parent=1 // pred_check_branch
      %11 = sbr.rel (0) target = $region5
    $region4: #{tpu_custom_call.1} parent=1 // pred_region
      _
    $region5: #{tpu_custom_call.1} parent=1 // pred_fallthru
      _
    // Predicated region
    $region6: #{tpu_custom_call.1} parent=1 // pred_check
      _
    $region7: #{tpu_custom_call.1} parent=1 // pred_check_branch
      %13 = sbr.rel (0) target = $region9
    $region8: #{tpu_custom_call.1} parent=1 // pred_region
      _
    $region9: #{tpu_custom_call.1} parent=1 // pred_fallthru
      _
    // Predicated region
    $region10: #{tpu_custom_call.1} parent=1 // pred_check
      _
    $region11: #{tpu_custom_call.1} parent=1 // pred_check_branch
      %15 = sbr.rel (0) target = $region13
    $region12: #{tpu_custom_call.1} parent=1 // pred_region
      _
    $region13: #{tpu_custom_call.1} parent=1 // pred_fallthru
      _
    // Predicated region
    $region14: #{tpu_custom_call.1} parent=1 // pred_check
      _
    $region15: #{tpu_custom_call.1} parent=1 // pred_check_branch
      %17 = sbr.rel (0) target = $region17
    $region16: #{tpu_custom_call.1} parent=1 // pred_region
      _
    $region17: #{tpu_custom_call.1} parent=1 // pred_fallthru
      _
    %p19 = scmp.eq.s32.totalorder 0, 0
    // Predicated region
    $region18: #{tpu_custom_call.1} parent=1 // pred_check
      %p20 = pneg %p19
    $region19: #{tpu_custom_call.1} parent=1 // pred_check_branch
      %22 = sbr.rel (%p20) target = $region21
    $region20: #{tpu_custom_call.1} parent=1 // pred_region
      %v23 = vld [vmem:[%s0] sm:$0xff]
      %v24 = vlaneseq
      %v25 = vand.u32 %v24, 127
      %26 = vset.pattern.permute.xlu0 0
      %27 = vperm.xlu0 %26, %v23
      %v28 = vpop.permute.xlu0 %27
      %vm29 = vcmp.eq.s32.totalorder %v25, %v28
      %v30 = vsel %vm29, 1, 0
      %v31 = vcvt.s32.f32 %v30
      %v32 = vadd.f32 %v31, 0.0
      %33 = vset.pattern.permute.xlu0 1
      %34 = vperm.xlu0 %33, %v23
      %v35 = vpop.permute.xlu0 %34
      %vm36 = vcmp.eq.s32.totalorder %v25, %v35
      %v37 = vsel %vm36, 1, 0
      %v38 = vcvt.s32.f32 %v37
      %v39 = vadd.f32 %v32, %v38
      %40 = vset.pattern.permute.xlu0 2
      %41 = vperm.xlu0 %40, %v23
      %v42 = vpop.permute.xlu0 %41
      %vm43 = vcmp.eq.s32.totalorder %v25, %v42
      %v44 = vsel %vm43, 1, 0
      %v45 = vcvt.s32.f32 %v44
      %v46 = vadd.f32 %v39, %v45
      %47 = vset.pattern.permute.xlu0 3
      %48 = vperm.xlu0 %47, %v23
      %v49 = vpop.permute.xlu0 %48
      %vm50 = vcmp.eq.s32.totalorder %v25, %v49
      %v51 = vsel %vm50, 1, 0
      %v52 = vcvt.s32.f32 %v51
      %v53 = vadd.f32 %v46, %v52
      %54 = vset.pattern.permute.xlu0 4
      %55 = vperm.xlu0 %54, %v23
      %v56 = vpop.permute.xlu0 %55
      %vm57 = vcmp.eq.s32.totalorder %v25, %v56
      %v58 = vsel %vm57, 1, 0
      %v59 = vcvt.s32.f32 %v58
      %v60 = vadd.f32 %v53, %v59
      %61 = vset.pattern.permute.xlu0 5
      %62 = vperm.xlu0 %61, %v23
      %v63 = vpop.permute.xlu0 %62
      %vm64 = vcmp.eq.s32.totalorder %v25, %v63
      %v65 = vsel %vm64, 1, 0
      %v66 = vcvt.s32.f32 %v65
      %v67 = vadd.f32 %v60, %v66
      %68 = vset.pattern.permute.xlu0 6
      %69 = vperm.xlu0 %68, %v23
      %v70 = vpop.permute.xlu0 %69
      %vm71 = vcmp.eq.s32.totalorder %v25, %v70
      %v72 = vsel %vm71, 1, 0
      %v73 = vcvt.s32.f32 %v72
      %v74 = vadd.f32 %v67, %v73
      %75 = vset.pattern.permute.xlu0 7
      %76 = vperm.xlu0 %75, %v23
      %v77 = vpop.permute.xlu0 %76
      %vm78 = vcmp.eq.s32.totalorder %v25, %v77
      %v79 = vsel %vm78, 1, 0
      %v80 = vcvt.s32.f32 %v79
      %v81 = vadd.f32 %v74, %v80
      %v82 = vld [vmem:[%s1] sm:$0xff]
      %v83 = vld [vmem:[%s1 + $0x8] sm:$0xff]
      %v84 = vld [vmem:[%s1 + $0x10] sm:$0xff]
      %v85 = vld [vmem:[%s1 + $0x18] sm:$0xff]
      %v86 = vld [vmem:[%s1 + $0x20] sm:$0xff]
      %v87 = vld [vmem:[%s1 + $0x28] sm:$0xff]
      %v88 = vld [vmem:[%s1 + $0x30] sm:$0xff]
      %v89 = vld [vmem:[%s1 + $0x38] sm:$0xff]
      %vm90 = vcmask 523264
      %v92 = vsel %vm90, %v81, 0
      %94 = vmatprep.subr.mxu0 0.0
      %95 = vmatpush1.msra.mxu0 %v82
      %96 = vmatprep.subr.mxu0 0.0
      %97 = vmatpush1.msra.mxu0 %v83
      %98 = vmatprep.subr.mxu0 0.0
      %99 = vmatpush1.msra.mxu0 %v84
      %100 = vmatprep.subr.mxu0 0.0
      %101 = vmatpush1.msra.mxu0 %v85
      %102 = vmatprep.subr.mxu0 0.0
      %103 = vmatpush1.msra.mxu0 %v86
      %104 = vmatprep.subr.mxu0 0.0
      %105 = vmatpush1.msra.mxu0 %v87
      %106 = vmatprep.subr.mxu0 0.0
      %107 = vmatpush1.msra.mxu0 %v88
      %108 = vmatprep.subr.mxu0 0.0
      %109 = vmatpush1.msra.mxu0 %v89
      %110 = vmatprep.subr.mxu0 0.0
      %111 = vmatpush1.msra.mxu0 0.0
      %112 = vmatprep.subr.mxu0 0.0
      %113 = vmatpush1.msra.mxu0 0.0
      %114 = vmatprep.subr.mxu0 0.0
      %115 = vmatpush1.msra.mxu0 0.0
      %116 = vmatprep.subr.mxu0 0.0
      %117 = vmatpush1.msra.mxu0 0.0
      %118 = vmatprep.subr.mxu0 0.0
      %119 = vmatpush1.msra.mxu0 0.0
      %120 = vmatprep.subr.mxu0 0.0
      %121 = vmatpush1.msra.mxu0 0.0
      %122 = vmatprep.subr.mxu0 0.0
      %123 = vmatpush1.msra.mxu0 0.0
      %124 = vmatprep.subr.mxu0 0.0
      %125 = vmatpush1.msra.mxu0 0.0
      %126 = vmatprep.subr.mxu0 0.0
      %127 = vmatpush1.msra.mxu0 0.0
      %128 = vmatprep.subr.mxu0 0.0
      %129 = vmatpush1.msra.mxu0 0.0
      %130 = vmatprep.subr.mxu0 0.0
      %131 = vmatpush1.msra.mxu0 0.0
      %132 = vmatprep.subr.mxu0 0.0
      %133 = vmatpush1.msra.mxu0 0.0
      %134 = vmatprep.subr.mxu0 0.0
      %135 = vmatpush1.msra.mxu0 0.0
      %136 = vmatprep.subr.mxu0 0.0
      %137 = vmatpush1.msra.mxu0 0.0
      %138 = vmatprep.subr.mxu0 0.0
      %139 = vmatpush1.msra.mxu0 0.0
      %140 = vmatprep.subr.mxu0 0.0
      %141 = vmatpush1.msra.mxu0 0.0
      %142 = vmatprep.subr.mxu0 0.0
      %143 = vmatpush1.msra.mxu0 0.0
      %144 = vmatprep.subr.mxu0 0.0
      %145 = vmatpush1.msra.mxu0 0.0
      %146 = vmatprep.subr.mxu0 0.0
      %147 = vmatpush1.msra.mxu0 0.0
      %148 = vmatprep.subr.mxu0 0.0
      %149 = vmatpush1.msra.mxu0 0.0
      %150 = vmatprep.subr.mxu0 0.0
      %151 = vmatpush1.msra.mxu0 0.0
      %152 = vmatprep.subr.mxu0 0.0
      %153 = vmatpush1.msra.mxu0 0.0
      %154 = vmatprep.subr.mxu0 0.0
      %155 = vmatpush1.msra.mxu0 0.0
      %156 = vmatprep.subr.mxu0 0.0
      %157 = vmatpush1.msra.mxu0 0.0
      %158 = vmatprep.mubr.f32.mxu0 0.0
      %159 = vmatmul.mubr.f32.gmra.mrb[0].mxu0 %v92
      %v160 = vpop.f32.mrb[0].mxu0
      %v161 = vadd.f32 0.0, %v160
      %v162 = vpop.f32.mrb[0].mxu0
      %163 = vdwg.mxu0
      %v164 = vmul.f32 %v161, 0.125
      %v165 = vpack.c.bf16 %v164, %v164
      %vm166 = vcmask 257024
      %167 = vst.msk [vmem:[#allocation2] sm:$0xf] %vm166, %v165
    $region21: #{tpu_custom_call.1} parent=1 // pred_fallthru
      _
    %v168 = vld [vmem:[#allocation2] sm:$0xf]
    %v169 = vld [vmem:[%s2] sm:$0xf]
    %v170 = vld [vmem:[%s2 + $0x4] sm:$0xf]
    %v171 = vld [vmem:[%s2 + $0x8] sm:$0xf]
    %v172 = vld [vmem:[%s2 + $0xc] sm:$0xf]
    %v173 = vld [vmem:[%s2 + $0x10] sm:$0xf]
    %v174 = vld [vmem:[%s2 + $0x14] sm:$0xf]
    %v175 = vld [vmem:[%s2 + $0x18] sm:$0xf]
    %v176 = vld [vmem:[%s2 + $0x1c] sm:$0xf]
    %v177 = vld [vmem:[%s2 + $0x20] sm:$0xf]
    %v178 = vld [vmem:[%s2 + $0x24] sm:$0xf]
    %v179 = vld [vmem:[%s2 + $0x28] sm:$0xf]
    %v180 = vld [vmem:[%s2 + $0x2c] sm:$0xf]
    %v181 = vld [vmem:[%s2 + $0x30] sm:$0xf]
    %v182 = vld [vmem:[%s2 + $0x34] sm:$0xf]
    %v183 = vld [vmem:[%s2 + $0x38] sm:$0xf]
    %v184 = vld [vmem:[%s2 + $0x3c] sm:$0xf]
    %v185 = vld [vmem:[%s3] sm:$0x1]
    %v187 = vlaneseq
    %v188 = vshrl.u32 %v187, 7
    %v189 = vsub.s32 0, %v188
    %v190 = vrot.slane %v185, %v189
    %v208 = vunpack.c.l.b16 %v169
    %v209 = vunpack.c.l.b16 %v170
    %v210 = vunpack.c.l.b16 %v171
    %v211 = vunpack.c.l.b16 %v172
    %v212 = vunpack.c.l.b16 %v173
    %v213 = vunpack.c.l.b16 %v174
    %v214 = vunpack.c.l.b16 %v175
    %v215 = vunpack.c.l.b16 %v176
    %v216 = vunpack.c.l.b16 %v177
    %v217 = vunpack.c.l.b16 %v178
    %v218 = vunpack.c.l.b16 %v179
    %v219 = vunpack.c.l.b16 %v180
    %v220 = vunpack.c.l.b16 %v181
    %v221 = vunpack.c.l.b16 %v182
    %v222 = vunpack.c.l.b16 %v183
    %v223 = vunpack.c.l.b16 %v184
    %v224 = vpack.c.b16 %v209, %v208
    %v225 = vpack.c.b16 %v211, %v210
    %v226 = vpack.c.b16 %v213, %v212
    %v227 = vpack.c.b16 %v215, %v214
    %v228 = vpack.c.b16 %v217, %v216
    %v229 = vpack.c.b16 %v219, %v218
    %v230 = vpack.c.b16 %v221, %v220
    %v231 = vpack.c.b16 %v223, %v222
    %vm232 = vcmask 261120
    %v234 = vsel %vm232, %v168, 0
    %v237 = vsel %vm232, %v224, 0
    %v240 = vsel %vm232, %v225, 0
    %v243 = vsel %vm232, %v226, 0
    %v246 = vsel %vm232, %v227, 0
    %v249 = vsel %vm232, %v228, 0
    %v252 = vsel %vm232, %v229, 0
    %v255 = vsel %vm232, %v230, 0
    %v258 = vsel %vm232, %v231, 0
    %260 = vmatprep.subr.bf16.mxu0 0
    %261 = vmatpush1.bf16.xpose.msra.mxu0 %v237
    %262 = vmatprep.subr.bf16.mxu0 0
    %263 = vmatpush1.bf16.xpose.msra.mxu0 %v240
    %264 = vmatprep.subr.bf16.mxu0 0
    %265 = vmatpush1.bf16.xpose.msra.mxu0 %v243
    %266 = vmatprep.subr.bf16.mxu0 0
    %267 = vmatpush1.bf16.xpose.msra.mxu0 %v246
    %268 = vmatprep.subr.bf16.mxu0 0
    %269 = vmatpush1.bf16.xpose.msra.mxu0 %v249
    %270 = vmatprep.subr.bf16.mxu0 0
    %271 = vmatpush1.bf16.xpose.msra.mxu0 %v252
    %272 = vmatprep.subr.bf16.mxu0 0
    %273 = vmatpush1.bf16.xpose.msra.mxu0 %v255
    %274 = vmatprep.subr.bf16.mxu0 0
    %275 = vmatpush1.bf16.xpose.msra.mxu0 %v258
    %276 = vmatprep.subr.bf16.mxu0 0
    %277 = vmatpush1.bf16.xpose.msra.mxu0 0
    %278 = vmatprep.subr.bf16.mxu0 0
    %279 = vmatpush1.bf16.xpose.msra.mxu0 0
    %280 = vmatprep.subr.bf16.mxu0 0
    %281 = vmatpush1.bf16.xpose.msra.mxu0 0
    %282 = vmatprep.subr.bf16.mxu0 0
    %283 = vmatpush1.bf16.xpose.msra.mxu0 0
    %284 = vmatprep.subr.bf16.mxu0 0
    %285 = vmatpush1.bf16.xpose.msra.mxu0 0
    %286 = vmatprep.subr.bf16.mxu0 0
    %287 = vmatpush1.bf16.xpose.msra.mxu0 0
    %288 = vmatprep.subr.bf16.mxu0 0
    %289 = vmatpush1.bf16.xpose.msra.mxu0 0
    %290 = vmatprep.subr.bf16.mxu0 0
    %291 = vmatpush1.bf16.xpose.msra.mxu0 0
    %292 = vmatprep.mubr.bf16.mxu0 0
    %293 = vmatmul.mubr.bf16.gmra.mrb[0].mxu0 %v234
    %v294 = vpop.f32.mrb[0].mxu0
    %v295 = vadd.f32 %v190, %v294
    %v296 = vpop.f32.mrb[0].mxu0
    %v297 = vpop.f32.mrb[0].mxu0
    %v298 = vpop.f32.mrb[0].mxu0
    %299 = vdwg.mxu0
    %300 = vst [vmem:[#allocation3] sm:$0xff] %v295
    // Predicated region
    $region22: #{tpu_custom_call.1} parent=1 // pred_check
      _
    $region23: #{tpu_custom_call.1} parent=1 // pred_check_branch
      %302 = sbr.rel (0) target = $region25
    $region24: #{tpu_custom_call.1} parent=1 // pred_region
      %s304 = ssub.s32 128, 128
      %305 = vsyncadd [#allocation4], %s304
      %s307 = sshll.u32 [#allocation3], 4
      %s308 = int_to_ptr.vmem [resolvable:$true] %s307
      %310 = dma.vmem_to_hbm [thread:$0]  %s308, 128, %s4, [#allocation4]
    $region25: #{tpu_custom_call.1} parent=1 // pred_fallthru
      _
    // Predicated region
    $region26: #{tpu_custom_call.1} parent=1 // pred_check
      _
    $region27: #{tpu_custom_call.1} parent=1 // pred_check_branch
      %312 = sbr.rel (0) target = $region29
    $region28: #{tpu_custom_call.1} parent=1 // pred_region
      %313 = dma.done [#allocation4], 128
    $region29: #{tpu_custom_call.1} parent=1 // pred_fallthru
      _
    %314 = vsyncpa [#allocation4], 1

</llo_original>
